<compile_context>
chip_gen: v7x
topology: tpu7x:2x2x1
jax: 0.10.0
libtpu: 0.0.40
codegen_flags: <defaults>
</compile_context>

<pallas_src>
import functools
import math

import jax
import jax.numpy as jnp
from jax import lax
from jax.experimental import pallas as pl
from jax.experimental.pallas import tpu as pltpu


def _round_up(n, m):
    return ((n + m - 1) // m) * m


def garch_kernel(x_ref, wts_ref, w_ref, o_ref, win_ref, *, nw_p, hist, s0, st):
    """Per-channel lag-weighted sum of x^2 + GARCH variance + sqrt.

    Grid: (channel blocks [parallel], time tiles [arbitrary, sequential]).

    x_ref   : (tq, cb)          current tile of raw inputs
    wts_ref : (nw_p, cb)        alpha * flipped beta-power lag weights (rows >= nw are 0)
    w_ref   : (1, cb)           omega^2 / (1 - beta)
    o_ref   : (tq, cb)          output tile of sigma
    win_ref : (hist+tq+8, cb)   VMEM scratch: [lag history | current x^2 | zero tail];
                                the history region is carried across time steps.
    nw_p    : padded lag count (multiple of 8)
    hist    : history rows (roundup(K-1, 8))
    s0      : hist - (K - 1), window offset of lag 0
    st      : sub-tile rows (accumulator stays register-resident)
    """
    t = pl.program_id(1)
    tq, cb = o_ref.shape

    # --- history handling: scratch carries lag history between time steps ---
    @pl.when(t == 0)
    def _():
        win_ref[pl.ds(0, hist), :] = jnp.zeros((hist, cb), jnp.float32)
        # zero-weight tail rows (read by padded lags, multiplied by 0 weights)
        win_ref[pl.ds(hist + tq, 8), :] = jnp.zeros((8, cb), jnp.float32)

    @pl.when(t > 0)
    def _():
        # last `hist` x^2 rows of the previous tile become this tile's history
        win_ref[pl.ds(0, hist), :] = win_ref[pl.ds(tq, hist), :]

    # --- square the current tile into the window (single HBM read of x) ---
    x = x_ref[...].astype(jnp.float32)
    win_ref[pl.ds(hist, tq), :] = x * x

    # --- lag accumulation over register-resident sub-tiles ---
    n_groups = nw_p // 8

    @pl.loop(0, tq // st)
    def _(sub):
        row0 = pl.multiple_of(sub * st, st)

        def lag_group(g, acc):
            base = pl.multiple_of(g * 8, 8)
            for u in range(8):                       # static unroll, fixed trip count
                k = base + u
                wk = wts_ref[pl.ds(k, 1), :]              # (1, cb), alpha folded in
                xk = win_ref[pl.ds(s0 + row0 + k, st), :]  # (st, cb) lag-k x^2 window
                acc = acc + wk * xk
            return acc

        acc = lax.fori_loop(0, n_groups, lag_group,
                            jnp.zeros((st, cb), jnp.float32))
        o_ref[pl.ds(row0, st), :] = jnp.sqrt(w_ref[...] + acc).astype(o_ref.dtype)


def garch_forward(x, alpha_p, beta_p, omega_p, *, buffer=1, n_ahead=1,
                  tq=512, st=32, cb=128):
    """Equivalent of GarchNet.forward(x) with raw (pre-sigmoid) parameters."""
    T, C = x.shape
    assert alpha_p.shape[0] == 1 and beta_p.shape[0] == 1, "order-1 GARCH params expected"
    assert cb % 128 == 0 and st % 8 == 0 and tq % st == 0 and T % tq == 0

    # --- parameter transforms (GarchNet.forward) ---
    alpha = jax.nn.sigmoid(alpha_p)                  # (1, C)
    beta = jax.nn.sigmoid(beta_p) * 0.9999           # (1, C)
    omega = jax.nn.sigmoid(omega_p)                  # (C,)
    omega_2 = omega ** 2
    w = (1.0 / (1.0 - beta)) * omega_2               # (1, C)

    # num_weights is a host-side Python int (torch does .item() under no_grad).
    # TODO(synk): inherent device->host sync for beta.max().item(); nw is
    # bucketed to a multiple of 8 so only a few kernel variants get compiled.
    beta_max = float(jnp.max(beta))
    nw = min(math.ceil(math.log(0.01, beta_max)) + 1, 100)
    K = nw + buffer                                  # conv length incl. trailing zeros
    nw_p = _round_up(nw, 8)                          # bucketed lag count (pad rows = 0)
    hist = _round_up(K - 1, 8)                       # history rows carried between tiles
    assert tq >= hist, "tq must cover the full lag history"

    # Flipped beta-power kernel (torch_garch) with alpha folded in; trailing
    # `buffer` zero rows and the nw_p padding contribute nothing.
    weight = jnp.cumprod(jnp.tile(beta, (nw, 1)), axis=0) / beta   # beta^0..beta^(nw-1)
    weight = jnp.flip(weight, axis=0)                              # beta^(nw-1)..beta^0
    wts = (alpha * weight).astype(jnp.float32)                     # (nw, C)

    # Lane-dense layout: channels padded to a multiple of cb (itself a multiple
    # of 128). Padded channels get weight 0 / w 1 / x 0 -> sigma 1, sliced off.
    Cp = _round_up(C, cb)
    if C == Cp and x.dtype == jnp.float32:
        xP = x                                       # no extra HBM copy when aligned
    else:
        xP = jnp.pad(x.astype(jnp.float32), ((0, 0), (0, Cp - C)))
    wtsP = jnp.pad(wts, ((0, nw_p - nw), (0, Cp - C)))
    wP = jnp.pad(w.astype(jnp.float32), ((0, 0), (0, Cp - C)), constant_values=1.0)

    grid = (Cp // cb, T // tq)
    kernel = functools.partial(garch_kernel, nw_p=nw_p, hist=hist,
                               s0=hist - (K - 1), st=st)
    sigma = pl.pallas_call(
        kernel,
        out_shape=jax.ShapeDtypeStruct((T, Cp), jnp.float32),
        grid=grid,
        in_specs=[
            pl.BlockSpec((tq, cb), lambda c, t: (t, c)),     # x (read once)
            pl.BlockSpec((nw_p, cb), lambda c, t: (0, c)),   # lag weights (resident)
            pl.BlockSpec((1, cb), lambda c, t: (0, c)),      # w (resident)
        ],
        out_specs=pl.BlockSpec((tq, cb), lambda c, t: (t, c)),
        scratch_shapes=[pltpu.VMEM((hist + tq + 8, cb), jnp.float32)],
        compiler_params=pltpu.CompilerParams(
            # channel blocks are independent (v7x megacore); the time axis
            # carries lag history in scratch so it must stay sequential.
            dimension_semantics=("parallel", "arbitrary")),
    )(xP, wtsP, wP)

    sigma = sigma[:, :C].astype(x.dtype)

    if n_ahead > 1:
        # n_ahead>1 correction is cheap elementwise glue; kept in plain JAX.
        a_b = jnp.clip(alpha + beta, 0.0, 0.99)
        a_b_n = a_b ** n_ahead
        co2 = (1.0 / n_ahead) * (1 - a_b_n) / (1 - a_b)
        co1 = (1 - co2) / (1 - a_b)
        var = co1 * omega_2 + co2 * (sigma ** 2)
        sigma = jnp.sqrt(var)
    return sigma


if __name__ == "__main__":
    key = jax.random.PRNGKey(0)
    T, C = 1024, 128                    # (time steps, in_features) — lane-dense C
    alpha_order, beta_order = 1, 1
    k1, k2, k3, k4 = jax.random.split(key, 4)

    x = jax.random.normal(k1, (T, C), jnp.float32)
    # deterministic in-script inits mirroring torch_uniform(lower, upper) shapes
    alpha_p = jax.random.uniform(k2, (alpha_order, C), jnp.float32, -4.0, -2.0)
    beta_p = jax.random.uniform(k3, (beta_order, C), jnp.float32, 1.0, 3.0)
    omega_p = jax.random.uniform(k4, (C,), jnp.float32, -3.0, -1.0)

    sigma = garch_forward(x, alpha_p, beta_p, omega_p, buffer=1, n_ahead=1,
                          tq=512, st=32)
    sigma = jax.block_until_ready(sigma)

    # Pure-JAX reference reproducing torch_garch/torch_wma semantics:
    # grouped conv1d(padding=K-1)[:, :T]  ==  sum_k weight[k] * x2pad[k : k+T]
    alpha = jax.nn.sigmoid(alpha_p)
    beta = jax.nn.sigmoid(beta_p) * 0.9999
    omega = jax.nn.sigmoid(omega_p)
    w_ref = (1.0 / (1.0 - beta)) * omega ** 2
    beta_max = float(jnp.max(beta))
    nw = min(math.ceil(math.log(0.01, beta_max)) + 1, 100)
    weight = jnp.flip(jnp.cumprod(jnp.tile(beta, (nw, 1)), axis=0) / beta, axis=0)
    weight = jnp.concatenate([weight, jnp.zeros((1, C), jnp.float32)], axis=0)  # buffer=1
    K = weight.shape[0]
    x2pad = jnp.concatenate([jnp.zeros((K - 1, C), jnp.float32), x ** 2], axis=0)
    a = jnp.zeros((T, C), jnp.float32)
    for k in range(K):
        a = a + weight[k:k + 1] * x2pad[k:k + T]
    ref = jnp.sqrt(w_ref + alpha * a)

    err = float(jnp.max(jnp.abs(sigma - ref)))
    assert jnp.allclose(sigma, ref, rtol=2e-5, atol=2e-5), f"max abs err {err}"
    print("KERNEL_OK")
</pallas_src>

<mosaic_0001>
module attributes {stable_mosaic.version = 11 : i64} {
  func.func @garch_kernel(%arg0: i32, %arg1: i32, %arg2: memref<512x128xf32, #tpu.memory_space<vmem>>, %arg3: memref<96x128xf32, #tpu.memory_space<vmem>>, %arg4: memref<1x128xf32, #tpu.memory_space<vmem>>, %arg5: memref<512x128xf32, #tpu.memory_space<vmem>>, %arg6: memref<616x128xf32, #tpu.memory_space<vmem>>) attributes {dimension_semantics = [#tpu.dimension_semantics<parallel>, #tpu.dimension_semantics<arbitrary>], iteration_bounds = array<i64: 1, 2>, scalar_prefetch = 0 : i64, scratch_operands = 1 : i64, tpu.core_type = #tpu.core_type<tc>, window_params = [{transform_indices = @transform_0, window_bounds = array<i64: 512, 128>}, {transform_indices = @transform_1, window_bounds = array<i64: 96, 128>}, {transform_indices = @transform_2, window_bounds = array<i64: 1, 128>}, {transform_indices = @transform_3, window_bounds = array<i64: 512, 128>}]} {
    %c0_i32 = arith.constant 0 : i32
    %0 = arith.cmpi eq, %arg1, %c0_i32 : i32
    %1 = arith.extui %0 : i1 to i32
    %c0_i32_0 = arith.constant 0 : i32
    %2 = arith.cmpi ne, %1, %c0_i32_0 : i32
    scf.if %2 {
      %cst = arith.constant 0.000000e+00 : f32
      %10 = vector.broadcast %cst : f32 to vector<96x128xf32>
      %c0_7 = arith.constant 0 : index
      %c0_8 = arith.constant 0 : index
      %11 = vector.load %arg6[%c0_7, %c0_8] : memref<616x128xf32, #tpu.memory_space<vmem>>, vector<96x128xf32>
      tpu.vector_store %arg6[%c0_7, %c0_8], %10 {strides = array<i32>} : memref<616x128xf32, #tpu.memory_space<vmem>>, vector<96x128xf32>,
      %cst_9 = arith.constant 0.000000e+00 : f32
      %12 = vector.broadcast %cst_9 : f32 to vector<8x128xf32>
      %c608 = arith.constant 608 : index
      %c0_10 = arith.constant 0 : index
      %13 = vector.load %arg6[%c608, %c0_10] : memref<616x128xf32, #tpu.memory_space<vmem>>, vector<8x128xf32>
      tpu.vector_store %arg6[%c608, %c0_10], %12 {strides = array<i32>} : memref<616x128xf32, #tpu.memory_space<vmem>>, vector<8x128xf32>,
    } else {
    }
    %c0_i32_1 = arith.constant 0 : i32
    %3 = arith.cmpi sgt, %arg1, %c0_i32_1 : i32
    %4 = arith.extui %3 : i1 to i32
    %c0_i32_2 = arith.constant 0 : i32
    %5 = arith.cmpi ne, %4, %c0_i32_2 : i32
    scf.if %5 {
      %c512 = arith.constant 512 : index
      %c0_7 = arith.constant 0 : index
      %10 = vector.load %arg6[%c512, %c0_7] : memref<616x128xf32, #tpu.memory_space<vmem>>, vector<96x128xf32>
      %c0_8 = arith.constant 0 : index
      %c0_9 = arith.constant 0 : index
      %11 = vector.load %arg6[%c0_8, %c0_9] : memref<616x128xf32, #tpu.memory_space<vmem>>, vector<96x128xf32>
      tpu.vector_store %arg6[%c0_8, %c0_9], %10 {strides = array<i32>} : memref<616x128xf32, #tpu.memory_space<vmem>>, vector<96x128xf32>,
    } else {
    }
    %c0 = arith.constant 0 : index
    %c0_3 = arith.constant 0 : index
    %6 = vector.load %arg2[%c0, %c0_3] : memref<512x128xf32, #tpu.memory_space<vmem>>, vector<512x128xf32>
    %7 = arith.mulf %6, %6 : vector<512x128xf32>
    %c96 = arith.constant 96 : index
    %c0_4 = arith.constant 0 : index
    %8 = vector.load %arg6[%c96, %c0_4] : memref<616x128xf32, #tpu.memory_space<vmem>>, vector<512x128xf32>
    tpu.vector_store %arg6[%c96, %c0_4], %7 {strides = array<i32>} : memref<616x128xf32, #tpu.memory_space<vmem>>, vector<512x128xf32>,
    %c0_i32_5 = arith.constant 0 : i32
    %c16_i32 = arith.constant 16 : i32
    %9 = arith.addi %c0_i32_5, %c16_i32 : i32
    %c1_i32 = arith.constant 1 : i32
    scf.for %arg7 = %c0_i32_5 to %9 step %c1_i32  : i32 {
      %c1_i32_7 = arith.constant 1 : i32
      %10 = arith.muli %arg7, %c1_i32_7 : i32
      %c0_i32_8 = arith.constant 0 : i32
      %11 = arith.addi %c0_i32_8, %10 : i32
      %c32_i32 = arith.constant 32 : i32
      %12 = arith.muli %11, %c32_i32 : i32
      %13 = tpu.assume_multiple %12, 32 : i32
      %cst = arith.constant 0.000000e+00 : f32
      %14 = vector.broadcast %cst : f32 to vector<32x128xf32>
      %c0_i32_9 = arith.constant 0 : i32
      %c12_i32 = arith.constant 12 : i32
      %15 = arith.addi %c0_i32_9, %c12_i32 : i32
      %c1_i32_10 = arith.constant 1 : i32
      %16 = scf.for %arg8 = %c0_i32_9 to %15 step %c1_i32_10 iter_args(%arg9 = %14) -> (vector<32x128xf32>)  : i32 {
        %c8_i32 = arith.constant 8 : i32
        %23 = arith.muli %arg8, %c8_i32 : i32
        %24 = tpu.assume_multiple %23, 8 : i32
        %c0_i32_15 = arith.constant 0 : i32
        %25 = arith.addi %24, %c0_i32_15 : i32
        %26 = arith.index_cast %25 : i32 to index
        %c0_16 = arith.constant 0 : index
        %27 = vector.load %arg3[%26, %c0_16] : memref<96x128xf32, #tpu.memory_space<vmem>>, vector<1x128xf32>
        %c1_i32_17 = arith.constant 1 : i32
        %28 = arith.addi %c1_i32_17, %13 : i32
        %29 = arith.addi %28, %25 : i32
        %30 = arith.index_cast %29 : i32 to index
        %c0_18 = arith.constant 0 : index
        %31 = vector.load %arg6[%30, %c0_18] : memref<616x128xf32, #tpu.memory_space<vmem>>, vector<32x128xf32>
        %32 = vector.broadcast %27 : vector<1x128xf32> to vector<32x128xf32>
        %33 = arith.mulf %32, %31 : vector<32x128xf32>
        %34 = arith.addf %arg9, %33 : vector<32x128xf32>
        %c1_i32_19 = arith.constant 1 : i32
        %35 = arith.addi %24, %c1_i32_19 : i32
        %36 = arith.index_cast %35 : i32 to index
        %c0_20 = arith.constant 0 : index
        %37 = vector.load %arg3[%36, %c0_20] : memref<96x128xf32, #tpu.memory_space<vmem>>, vector<1x128xf32>
        %c1_i32_21 = arith.constant 1 : i32
        %38 = arith.addi %c1_i32_21, %13 : i32
        %39 = arith.addi %38, %35 : i32
        %40 = arith.index_cast %39 : i32 to index
        %c0_22 = arith.constant 0 : index
        %41 = vector.load %arg6[%40, %c0_22] : memref<616x128xf32, #tpu.memory_space<vmem>>, vector<32x128xf32>
        %42 = vector.broadcast %37 : vector<1x128xf32> to vector<32x128xf32>
        %43 = arith.mulf %42, %41 : vector<32x128xf32>
        %44 = arith.addf %34, %43 : vector<32x128xf32>
        %c2_i32 = arith.constant 2 : i32
        %45 = arith.addi %24, %c2_i32 : i32
        %46 = arith.index_cast %45 : i32 to index
        %c0_23 = arith.constant 0 : index
        %47 = vector.load %arg3[%46, %c0_23] : memref<96x128xf32, #tpu.memory_space<vmem>>, vector<1x128xf32>
        %c1_i32_24 = arith.constant 1 : i32
        %48 = arith.addi %c1_i32_24, %13 : i32
        %49 = arith.addi %48, %45 : i32
        %50 = arith.index_cast %49 : i32 to index
        %c0_25 = arith.constant 0 : index
        %51 = vector.load %arg6[%50, %c0_25] : memref<616x128xf32, #tpu.memory_space<vmem>>, vector<32x128xf32>
        %52 = vector.broadcast %47 : vector<1x128xf32> to vector<32x128xf32>
        %53 = arith.mulf %52, %51 : vector<32x128xf32>
        %54 = arith.addf %44, %53 : vector<32x128xf32>
        %c3_i32 = arith.constant 3 : i32
        %55 = arith.addi %24, %c3_i32 : i32
        %56 = arith.index_cast %55 : i32 to index
        %c0_26 = arith.constant 0 : index
        %57 = vector.load %arg3[%56, %c0_26] : memref<96x128xf32, #tpu.memory_space<vmem>>, vector<1x128xf32>
        %c1_i32_27 = arith.constant 1 : i32
        %58 = arith.addi %c1_i32_27, %13 : i32
        %59 = arith.addi %58, %55 : i32
        %60 = arith.index_cast %59 : i32 to index
        %c0_28 = arith.constant 0 : index
        %61 = vector.load %arg6[%60, %c0_28] : memref<616x128xf32, #tpu.memory_space<vmem>>, vector<32x128xf32>
        %62 = vector.broadcast %57 : vector<1x128xf32> to vector<32x128xf32>
        %63 = arith.mulf %62, %61 : vector<32x128xf32>
        %64 = arith.addf %54, %63 : vector<32x128xf32>
        %c4_i32 = arith.constant 4 : i32
        %65 = arith.addi %24, %c4_i32 : i32
        %66 = arith.index_cast %65 : i32 to index
        %c0_29 = arith.constant 0 : index
        %67 = vector.load %arg3[%66, %c0_29] : memref<96x128xf32, #tpu.memory_space<vmem>>, vector<1x128xf32>
        %c1_i32_30 = arith.constant 1 : i32
        %68 = arith.addi %c1_i32_30, %13 : i32
        %69 = arith.addi %68, %65 : i32
        %70 = arith.index_cast %69 : i32 to index
        %c0_31 = arith.constant 0 : index
        %71 = vector.load %arg6[%70, %c0_31] : memref<616x128xf32, #tpu.memory_space<vmem>>, vector<32x128xf32>
        %72 = vector.broadcast %67 : vector<1x128xf32> to vector<32x128xf32>
        %73 = arith.mulf %72, %71 : vector<32x128xf32>
        %74 = arith.addf %64, %73 : vector<32x128xf32>
        %c5_i32 = arith.constant 5 : i32
        %75 = arith.addi %24, %c5_i32 : i32
        %76 = arith.index_cast %75 : i32 to index
        %c0_32 = arith.constant 0 : index
        %77 = vector.load %arg3[%76, %c0_32] : memref<96x128xf32, #tpu.memory_space<vmem>>, vector<1x128xf32>
        %c1_i32_33 = arith.constant 1 : i32
        %78 = arith.addi %c1_i32_33, %13 : i32
        %79 = arith.addi %78, %75 : i32
        %80 = arith.index_cast %79 : i32 to index
        %c0_34 = arith.constant 0 : index
        %81 = vector.load %arg6[%80, %c0_34] : memref<616x128xf32, #tpu.memory_space<vmem>>, vector<32x128xf32>
        %82 = vector.broadcast %77 : vector<1x128xf32> to vector<32x128xf32>
        %83 = arith.mulf %82, %81 : vector<32x128xf32>
        %84 = arith.addf %74, %83 : vector<32x128xf32>
        %c6_i32 = arith.constant 6 : i32
        %85 = arith.addi %24, %c6_i32 : i32
        %86 = arith.index_cast %85 : i32 to index
        %c0_35 = arith.constant 0 : index
        %87 = vector.load %arg3[%86, %c0_35] : memref<96x128xf32, #tpu.memory_space<vmem>>, vector<1x128xf32>
        %c1_i32_36 = arith.constant 1 : i32
        %88 = arith.addi %c1_i32_36, %13 : i32
        %89 = arith.addi %88, %85 : i32
        %90 = arith.index_cast %89 : i32 to index
        %c0_37 = arith.constant 0 : index
        %91 = vector.load %arg6[%90, %c0_37] : memref<616x128xf32, #tpu.memory_space<vmem>>, vector<32x128xf32>
        %92 = vector.broadcast %87 : vector<1x128xf32> to vector<32x128xf32>
        %93 = arith.mulf %92, %91 : vector<32x128xf32>
        %94 = arith.addf %84, %93 : vector<32x128xf32>
        %c7_i32 = arith.constant 7 : i32
        %95 = arith.addi %24, %c7_i32 : i32
        %96 = arith.index_cast %95 : i32 to index
        %c0_38 = arith.constant 0 : index
        %97 = vector.load %arg3[%96, %c0_38] : memref<96x128xf32, #tpu.memory_space<vmem>>, vector<1x128xf32>
        %c1_i32_39 = arith.constant 1 : i32
        %98 = arith.addi %c1_i32_39, %13 : i32
        %99 = arith.addi %98, %95 : i32
        %100 = arith.index_cast %99 : i32 to index
        %c0_40 = arith.constant 0 : index
        %101 = vector.load %arg6[%100, %c0_40] : memref<616x128xf32, #tpu.memory_space<vmem>>, vector<32x128xf32>
        %102 = vector.broadcast %97 : vector<1x128xf32> to vector<32x128xf32>
        %103 = arith.mulf %102, %101 : vector<32x128xf32>
        %104 = arith.addf %94, %103 : vector<32x128xf32>
        scf.yield %104 : vector<32x128xf32>
      }
      %c12_i32_11 = arith.constant 12 : i32
      %c0_12 = arith.constant 0 : index
      %c0_13 = arith.constant 0 : index
      %17 = vector.load %arg4[%c0_12, %c0_13] : memref<1x128xf32, #tpu.memory_space<vmem>>, vector<1x128xf32>
      %18 = vector.broadcast %17 : vector<1x128xf32> to vector<32x128xf32>
      %19 = arith.addf %18, %16 : vector<32x128xf32>
      %20 = math.sqrt %19 : vector<32x128xf32>
      %21 = arith.index_cast %13 : i32 to index
      %c0_14 = arith.constant 0 : index
      %22 = vector.load %arg5[%21, %c0_14] : memref<512x128xf32, #tpu.memory_space<vmem>>, vector<32x128xf32>
      tpu.vector_store %arg5[%21, %c0_14], %20 {strides = array<i32>} : memref<512x128xf32, #tpu.memory_space<vmem>>, vector<32x128xf32>,
    }
    %c16_i32_6 = arith.constant 16 : i32
    return
  }
  func.func @transform_0(%arg0: i32, %arg1: i32) -> (i32, i32) {
    %c0_i32 = arith.constant 0 : i32
    return %arg1, %arg0 : i32, i32
  }
  func.func @transform_1(%arg0: i32, %arg1: i32) -> (i32, i32) {
    %c0_i32 = arith.constant 0 : i32
    %c0_i32_0 = arith.constant 0 : i32
    return %c0_i32, %arg0 : i32, i32
  }
  func.func @transform_2(%arg0: i32, %arg1: i32) -> (i32, i32) {
    %c0_i32 = arith.constant 0 : i32
    %c0_i32_0 = arith.constant 0 : i32
    return %c0_i32, %arg0 : i32, i32
  }
  func.func @transform_3(%arg0: i32, %arg1: i32) -> (i32, i32) {
    %c0_i32 = arith.constant 0 : i32
    return %arg1, %arg0 : i32, i32
  }
}

</mosaic_0001>

<llo_original>
// kernel: tpu_custom_call.1
$region0: #{tpu_custom_call.1}
  #allocation0 [shape = 'u32[]', space=smem, size = 0x4, offset = 0x4, fixed_abs, tag = 'smem constant byte address 0x4 - core index']
  #allocation1 [shape = 'u32[144,128]{1,0:T(1,128)}', space=vmem, size = 0x12000, scoped, tag = 'internal scratch']
  #allocation2 [shape = 'f32[616,128]{1,0:T(8,128)}', space=vmem, size = 0x4d000, scoped, tag = 'scratch operand']
  %s0 = inlined_call_operand.hbm [shape: f32[1024,128], index: 0, kind: input, shape index: {}]
  %s1 = inlined_call_operand.hbm [shape: f32[96,128], index: 1, kind: input, shape index: {}]
  %s2 = inlined_call_operand.vmem [shape: f32[1,128], index: 2, kind: input, shape index: {}]
  %s3 = inlined_call_operand.hbm [shape: f32[1024,128], index: 3, kind: output, shape index: {}]
  %s4 = sld [smem:[#allocation0]]
  $region75: #{tpu_custom_call.1} parent=0
    _
  %s6 = ssub.s32 1, %s4
  %s7 = scalar_select 0, %s6, %s4
  $region1: #{tpu_custom_call.1} parent=0
    #allocation3 [shape = 'u8[524288]{0}', space=vmem, size = 0x80000, scoped, tag = 'input window, operand 0']
    #allocation4 [shape = 's32[2]{0}', space=sflag, size = 0x8, scoped, tag = 'scoped memory for tpu_custom_call.1']
    #allocation5 [shape = 's32[2]{0}', space=sflag, size = 0x8, scoped, tag = 'scoped memory for tpu_custom_call.1']
    #allocation6 [shape = 'u8[49152]{0}', space=vmem, size = 0xc000, scoped, tag = 'input window, operand 1, single buffered']
    #allocation7 [shape = 's32[1]{0}', space=sflag, size = 0x4, scoped, tag = 'scoped memory for tpu_custom_call.1']
    #allocation8 [shape = 'u8[524288]{0}', space=vmem, size = 0x80000, scoped, tag = 'output window, operand 0']
    %8 = vsyncpa [#allocation4], 0
    %s9 = scalar_lea.sflag [#allocation4], 1
    %10 = vsyncpa %s9, 0
    %11 = vsyncpa [#allocation7], 0
    %12 = vsyncpa [#allocation5], 0
    %s13 = scalar_lea.sflag [#allocation5], 1
    %14 = vsyncpa %s13, 0
    loop: start=0, step=1, limit=4
    $region2: #{tpu_custom_call.1} parent=1 // loop_pre_header
      _
    $region3: #{tpu_custom_call.1} parent=1 // loop_header
      %s16 = sphi 0, %s20
      %p17 = scmp.ge.s32.totalorder %s16, 4
      %s23 = sphi 0, %s35
      %s24 = sphi 0, %s31
      %s25 = sphi 0, %s23
      %s26 = sphi 0, %s24
      %s27 = sphi 0, %s25
      %s28 = sphi 0, %s26
      %s40 = sphi 0, %s42
      %s43 = sphi 0, %s40
      %s44 = sphi 0, %s43
      %s60 = sphi 0, %s44
      %s66 = sphi 0, %s68
      %s69 = sphi 0, %s66
      %s70 = sphi 0, %s69
      %s86 = sphi 0, %s70
      %s92 = sphi 0, %s94
      %s95 = sphi 0, %s92
      %s96 = sphi 0, %s95
      %s112 = sphi 0, %s96
      %s120 = sphi 0, %s122
      %s123 = sphi 0, %s120
      %s124 = sphi 0, %s123
      %s140 = sphi 0, %s124
    $region4: #{tpu_custom_call.1} parent=1 // loop_header_branch
      %19 = sbr.rel (%p17) target = $region8
    $region5: #{tpu_custom_call.1} parent=1 // loop_body
      %s21 = ssub.s32 %s16, 1
      %s22 = ssub.s32 %s16, 2
      %s29 = sadd.s32 1, %s24
      %p30 = scmp.ge.s32.totalorder %s29, 2
      %s31 = scalar_select %p30, 0, %s29
      %s32 = sadd.s32 1, %s23
      %s33 = scalar_select %p30, %s32, %s23
      %p34 = scmp.ge.s32.totalorder %s33, 1
      %s35 = scalar_select %p34, 0, %s33
      %s36 = ssub.s32 %s24, %s31
      %s37 = ssub.s32 %s23, %s35
      %s38 = sor.u32 %s36, %s37
      %p39 = scmp.eq.s32.totalorder %s38, 0
      %s41 = sadd.s32 %s40, 1
      %s42 = scalar_select %p39, %s40, %s41
      %p45 = pneg %p39
      %p46 = scmp.eq.s32.totalorder %s16, 1
      %p47 = por %p45, %p46
      %p48 = scmp.ne.s32.totalorder %s40, %s43
      %p49 = scmp.eq.s32.totalorder %s16, 0
      %p50 = por %p48, %p49
      %p51 = scmp.ne.s32.totalorder %s40, %s43
      %p52 = scmp.eq.s32.totalorder %s21, 1
      %p53 = por %p51, %p52
      %p54 = scmp.ne.s32.totalorder %s43, %s44
      %p55 = scmp.eq.s32.totalorder %s21, 0
      %p56 = por %p54, %p55
      %p57 = scmp.ne.s32.totalorder %s43, %s44
      %p58 = scmp.eq.s32.totalorder %s22, 1
      %p59 = por %p57, %p58
      %p61 = scmp.ne.s32.totalorder %s44, %s60
      %p62 = scmp.eq.s32.totalorder %s22, 0
      %p63 = por %p61, %p62
      %s64 = ssub.s32 %s23, %s35
      %p65 = scmp.eq.s32.totalorder %s64, 0
      %s67 = sadd.s32 %s66, 1
      %s68 = scalar_select %p65, %s66, %s67
      %p71 = pneg %p65
      %p72 = scmp.eq.s32.totalorder %s16, 1
      %p73 = por %p71, %p72
      %p74 = scmp.ne.s32.totalorder %s66, %s69
      %p75 = scmp.eq.s32.totalorder %s16, 0
      %p76 = por %p74, %p75
      %p77 = scmp.ne.s32.totalorder %s66, %s69
      %p78 = scmp.eq.s32.totalorder %s21, 1
      %p79 = por %p77, %p78
      %p80 = scmp.ne.s32.totalorder %s69, %s70
      %p81 = scmp.eq.s32.totalorder %s21, 0
      %p82 = por %p80, %p81
      %p83 = scmp.ne.s32.totalorder %s69, %s70
      %p84 = scmp.eq.s32.totalorder %s22, 1
      %p85 = por %p83, %p84
      %p87 = scmp.ne.s32.totalorder %s70, %s86
      %p88 = scmp.eq.s32.totalorder %s22, 0
      %p89 = por %p87, %p88
      %s90 = ssub.s32 %s23, %s35
      %p91 = scmp.eq.s32.totalorder %s90, 0
      %s93 = sadd.s32 %s92, 1
      %s94 = scalar_select %p91, %s92, %s93
      %p97 = pneg %p91
      %p98 = scmp.eq.s32.totalorder %s16, 1
      %p99 = por %p97, %p98
      %p100 = scmp.ne.s32.totalorder %s92, %s95
      %p101 = scmp.eq.s32.totalorder %s16, 0
      %p102 = por %p100, %p101
      %p103 = scmp.ne.s32.totalorder %s92, %s95
      %p104 = scmp.eq.s32.totalorder %s21, 1
      %p105 = por %p103, %p104
      %p106 = scmp.ne.s32.totalorder %s95, %s96
      %p107 = scmp.eq.s32.totalorder %s21, 0
      %p108 = por %p106, %p107
      %p109 = scmp.ne.s32.totalorder %s95, %s96
      %p110 = scmp.eq.s32.totalorder %s22, 1
      %p111 = por %p109, %p110
      %p113 = scmp.ne.s32.totalorder %s96, %s112
      %p114 = scmp.eq.s32.totalorder %s22, 0
      %p115 = por %p113, %p114
      %s116 = ssub.s32 %s24, %s31
      %s117 = ssub.s32 %s23, %s35
      %s118 = sor.u32 %s116, %s117
      %p119 = scmp.eq.s32.totalorder %s118, 0
      %s121 = sadd.s32 %s120, 1
      %s122 = scalar_select %p119, %s120, %s121
      %p125 = pneg %p119
      %p126 = scmp.eq.s32.totalorder %s16, 1
      %p127 = por %p125, %p126
      %p128 = scmp.ne.s32.totalorder %s120, %s123
      %p129 = scmp.eq.s32.totalorder %s16, 0
      %p130 = por %p128, %p129
      %p131 = scmp.ne.s32.totalorder %s120, %s123
      %p132 = scmp.eq.s32.totalorder %s21, 1
      %p133 = por %p131, %p132
      %p134 = scmp.ne.s32.totalorder %s123, %s124
      %p135 = scmp.eq.s32.totalorder %s21, 0
      %p136 = por %p134, %p135
      %p137 = scmp.ne.s32.totalorder %s123, %s124
      %p138 = scmp.eq.s32.totalorder %s22, 1
      %p139 = por %p137, %p138
      %p141 = scmp.ne.s32.totalorder %s124, %s140
      %p142 = scmp.eq.s32.totalorder %s22, 0
      %p143 = por %p141, %p142
      %p144 = scmp.le.s32.totalorder 1, %s16
      %p145 = scmp.lt.s32.totalorder %s16, 3
      %p146 = pnand %p144, %p145
      %p147 = pneg %p146
      // Predicated region
      $region9: #{tpu_custom_call.1} parent=5 // pred_check
        _
      $region10: #{tpu_custom_call.1} parent=5 // pred_check_branch
        %149 = sbr.rel (%p146) target = $region12
      $region11: #{tpu_custom_call.1} parent=5 // pred_region
        %s150 = ssub.s32 %s16, 1
        // Predicated region
        $region13: #{tpu_custom_call.1} parent=11 // pred_check
          %p151 = pneg %p82
        $region14: #{tpu_custom_call.1} parent=11 // pred_check_branch
          %153 = sbr.rel (%p151) target = $region16
        $region15: #{tpu_custom_call.1} parent=11 // pred_region
          %s155 = ssub.s32 1536, 1536
          %156 = vsyncadd [#allocation7], %s155
          %s157 = smul.addr %s25, 128
          %s158 = scalar_lea.hbm %s1, %s157
          %s159 = sshll.u32 [#allocation6], 4
          %s160 = int_to_ptr.vmem [resolvable:$true] %s159
          %165 = dma.hbm_to_vmem [thread:$0]  %s158, 1536, %s160, [#allocation7], 128, 128, 8
        $region16: #{tpu_custom_call.1} parent=11 // pred_fallthru
          _
        // Predicated region
        $region17: #{tpu_custom_call.1} parent=11 // pred_check
          %p166 = pneg %p108
        $region18: #{tpu_custom_call.1} parent=11 // pred_check_branch
          %168 = sbr.rel (%p166) target = $region20
        $region19: #{tpu_custom_call.1} parent=11 // pred_region
          %p169 = scmp.lt.s32.totalorder %s25, 0
          %s170 = scalar_select %p169, %s25, 0
          %s171 = scalar_lea.vmem %s2, %s170
        $region20: #{tpu_custom_call.1} parent=11 // pred_fallthru
          _
      $region12: #{tpu_custom_call.1} parent=5 // pred_fallthru
        _
      %p172 = scmp.lt.s32.totalorder %s16, 2
      // Predicated region
      $region21: #{tpu_custom_call.1} parent=5 // pred_check
        %p173 = pneg %p172
      $region22: #{tpu_custom_call.1} parent=5 // pred_check_branch
        %175 = sbr.rel (%p173) target = $region24
      $region23: #{tpu_custom_call.1} parent=5 // pred_region
        // Predicated region
        $region25: #{tpu_custom_call.1} parent=23 // pred_check
          %p176 = pneg %p50
        $region26: #{tpu_custom_call.1} parent=23 // pred_check_branch
          %178 = sbr.rel (%p176) target = $region28
        $region27: #{tpu_custom_call.1} parent=23 // pred_region
          %s179 = sand.u32 %s40, 1
          %s180 = scalar_lea.sflag [#allocation4], %s179
          %s181 = sand.u32 %s40, 1
          %s182 = smul.addr %s181, 512
          %s183 = scalar_lea.vmem [#allocation3], %s182
          %s184 = smul.u32 64, %s24
          %s186 = ssub.s32 8192, 8192
          %187 = vsyncadd %s180, %s186
          %s188 = sadd.s32 %s23, %s184
          %s189 = smul.addr %s188, 128
          %s190 = scalar_lea.hbm %s0, %s189
          %s191 = sshll.u32 %s183, 4
          %s192 = int_to_ptr.vmem [resolvable:$true] %s191
          %197 = dma.hbm_to_vmem [thread:$0]  %s190, 8192, %s192, %s180, 128, 128, 8
        $region28: #{tpu_custom_call.1} parent=23 // pred_fallthru
          _
      $region24: #{tpu_custom_call.1} parent=5 // pred_fallthru
        _
      %p198 = scmp.le.s32.totalorder 1, %s16
      %p199 = scmp.lt.s32.totalorder %s16, 3
      %p200 = pnand %p198, %p199
      %p201 = pneg %p200
      // Predicated region
      $region29: #{tpu_custom_call.1} parent=5 // pred_check
        _
      $region30: #{tpu_custom_call.1} parent=5 // pred_check_branch
        %203 = sbr.rel (%p200) target = $region32
      $region31: #{tpu_custom_call.1} parent=5 // pred_region
        %s204 = ssub.s32 %s16, 1
        %s205 = sand.u32 %s43, 1
        %s206 = scalar_lea.sflag [#allocation4], %s205
        %s207 = sand.u32 %s43, 1
        %s208 = smul.addr %s207, 512
        %s209 = scalar_lea.vmem [#allocation3], %s208
        // Predicated region
        $region33: #{tpu_custom_call.1} parent=31 // pred_check
          %p210 = pneg %p56
        $region34: #{tpu_custom_call.1} parent=31 // pred_check_branch
          %212 = sbr.rel (%p210) target = $region36
        $region35: #{tpu_custom_call.1} parent=31 // pred_region
          %213 = dma.done %s206, 8192
        $region36: #{tpu_custom_call.1} parent=31 // pred_fallthru
          _
        // Predicated region
        $region37: #{tpu_custom_call.1} parent=31 // pred_check
          %p214 = pneg %p82
        $region38: #{tpu_custom_call.1} parent=31 // pred_check_branch
          %216 = sbr.rel (%p214) target = $region40
        $region39: #{tpu_custom_call.1} parent=31 // pred_region
          %217 = dma.done [#allocation7], 1536
        $region40: #{tpu_custom_call.1} parent=31 // pred_fallthru
          _
        %s218 = sand.u32 %s43, 1
        %s219 = scalar_lea.sflag [#allocation4], %s218
        %s220 = sand.u32 %s43, 1
        %s221 = smul.addr %s220, 512
        %s222 = scalar_lea.vmem [#allocation3], %s221
        %p223 = pneg %p56
        %p224 = pneg %p53
        %p225 = pneg %p82
        %p226 = pneg %p79
        %p227 = scmp.lt.s32.totalorder %s25, 0
        %s228 = scalar_select %p227, %s25, 0
        %s229 = scalar_lea.vmem %s2, %s228
        %p230 = pneg %p108
        %p231 = pneg %p105
        %p232 = pneg %p136
        %p233 = pneg %p133
        %s234 = sand.u32 %s123, 1
        %s235 = scalar_lea.sflag [#allocation5], %s234
        %s236 = sand.u32 %s123, 1
        %s237 = smul.addr %s236, 512
        %s238 = scalar_lea.vmem [#allocation8], %s237
        %s239 = smul.u32 64, %s26
        %p240 = scmp.lt.s32.totalorder %s25, 0
        %s241 = scalar_select %p240, %s25, 0
        %s242 = scalar_lea.vmem %s2, %s241
        %s243 = smul.u32 64, %s26
        %p244 = scmp.eq.s32.totalorder %s26, 0
        // Predicated region
        $region41: #{tpu_custom_call.1} parent=31 // pred_check
          %p245 = pneg %p244
        $region42: #{tpu_custom_call.1} parent=31 // pred_check_branch
          %247 = sbr.rel (%p245) target = $region44
        $region43: #{tpu_custom_call.1} parent=31 // pred_region
          %248 = vst [vmem:[#allocation2] sm:$0xff] 0.0
          %249 = vst [vmem:[#allocation2 + $0x8] sm:$0xff] 0.0
          %250 = vst [vmem:[#allocation2 + $0x10] sm:$0xff] 0.0
          %251 = vst [vmem:[#allocation2 + $0x18] sm:$0xff] 0.0
          %252 = vst [vmem:[#allocation2 + $0x20] sm:$0xff] 0.0
          %253 = vst [vmem:[#allocation2 + $0x28] sm:$0xff] 0.0
          %254 = vst [vmem:[#allocation2 + $0x30] sm:$0xff] 0.0
          %255 = vst [vmem:[#allocation2 + $0x38] sm:$0xff] 0.0
          %256 = vst [vmem:[#allocation2 + $0x40] sm:$0xff] 0.0
          %257 = vst [vmem:[#allocation2 + $0x48] sm:$0xff] 0.0
          %258 = vst [vmem:[#allocation2 + $0x50] sm:$0xff] 0.0
          %259 = vst [vmem:[#allocation2 + $0x58] sm:$0xff] 0.0
          %260 = vst [vmem:[#allocation2 + $0x260] sm:$0xff] 0.0
        $region44: #{tpu_custom_call.1} parent=31 // pred_fallthru
          _
        %p261 = scmp.gt.s32.totalorder %s26, 0
        // Predicated region
        $region45: #{tpu_custom_call.1} parent=31 // pred_check
          %p262 = pneg %p261
        $region46: #{tpu_custom_call.1} parent=31 // pred_check_branch
          %264 = sbr.rel (%p262) target = $region48
        $region47: #{tpu_custom_call.1} parent=31 // pred_region
          %v265 = vld [vmem:[#allocation2 + $0x200] sm:$0xff]
          %v266 = vld [vmem:[#allocation2 + $0x208] sm:$0xff]
          %v267 = vld [vmem:[#allocation2 + $0x210] sm:$0xff]
          %v268 = vld [vmem:[#allocation2 + $0x218] sm:$0xff]
          %v269 = vld [vmem:[#allocation2 + $0x220] sm:$0xff]
          %v270 = vld [vmem:[#allocation2 + $0x228] sm:$0xff]
          %v271 = vld [vmem:[#allocation2 + $0x230] sm:$0xff]
          %v272 = vld [vmem:[#allocation2 + $0x238] sm:$0xff]
          %v273 = vld [vmem:[#allocation2 + $0x240] sm:$0xff]
          %v274 = vld [vmem:[#allocation2 + $0x248] sm:$0xff]
          %v275 = vld [vmem:[#allocation2 + $0x250] sm:$0xff]
          %v276 = vld [vmem:[#allocation2 + $0x258] sm:$0xff]
          %277 = vst [vmem:[#allocation2] sm:$0xff] %v265
          %278 = vst [vmem:[#allocation2 + $0x8] sm:$0xff] %v266
          %279 = vst [vmem:[#allocation2 + $0x10] sm:$0xff] %v267
          %280 = vst [vmem:[#allocation2 + $0x18] sm:$0xff] %v268
          %281 = vst [vmem:[#allocation2 + $0x20] sm:$0xff] %v269
          %282 = vst [vmem:[#allocation2 + $0x28] sm:$0xff] %v270
          %283 = vst [vmem:[#allocation2 + $0x30] sm:$0xff] %v271
          %284 = vst [vmem:[#allocation2 + $0x38] sm:$0xff] %v272
          %285 = vst [vmem:[#allocation2 + $0x40] sm:$0xff] %v273
          %286 = vst [vmem:[#allocation2 + $0x48] sm:$0xff] %v274
          %287 = vst [vmem:[#allocation2 + $0x50] sm:$0xff] %v275
          %288 = vst [vmem:[#allocation2 + $0x58] sm:$0xff] %v276
        $region48: #{tpu_custom_call.1} parent=31 // pred_fallthru
          _
        %v289 = vld [vmem:[%s209] sm:$0xff]
        %v290 = vld [vmem:[%s209 + $0x8] sm:$0xff]
        %v291 = vld [vmem:[%s209 + $0x10] sm:$0xff]
        %v292 = vld [vmem:[%s209 + $0x18] sm:$0xff]
        %v293 = vld [vmem:[%s209 + $0x20] sm:$0xff]
        %v294 = vld [vmem:[%s209 + $0x28] sm:$0xff]
        %v295 = vld [vmem:[%s209 + $0x30] sm:$0xff]
        %v296 = vld [vmem:[%s209 + $0x38] sm:$0xff]
        %v297 = vld [vmem:[%s209 + $0x40] sm:$0xff]
        %v298 = vld [vmem:[%s209 + $0x48] sm:$0xff]
        %v299 = vld [vmem:[%s209 + $0x50] sm:$0xff]
        %v300 = vld [vmem:[%s209 + $0x58] sm:$0xff]
        %v301 = vld [vmem:[%s209 + $0x60] sm:$0xff]
        %v302 = vld [vmem:[%s209 + $0x68] sm:$0xff]
        %v303 = vld [vmem:[%s209 + $0x70] sm:$0xff]
        %v304 = vld [vmem:[%s209 + $0x78] sm:$0xff]
        %v305 = vld [vmem:[%s209 + $0x80] sm:$0xff]
        %v306 = vld [vmem:[%s209 + $0x88] sm:$0xff]
        %v307 = vld [vmem:[%s209 + $0x90] sm:$0xff]
        %v308 = vld [vmem:[%s209 + $0x98] sm:$0xff]
        %v309 = vld [vmem:[%s209 + $0xa0] sm:$0xff]
        %v310 = vld [vmem:[%s209 + $0xa8] sm:$0xff]
        %v311 = vld [vmem:[%s209 + $0xb0] sm:$0xff]
        %v312 = vld [vmem:[%s209 + $0xb8] sm:$0xff]
        %v313 = vld [vmem:[%s209 + $0xc0] sm:$0xff]
        %v314 = vld [vmem:[%s209 + $0xc8] sm:$0xff]
        %v315 = vld [vmem:[%s209 + $0xd0] sm:$0xff]
        %v316 = vld [vmem:[%s209 + $0xd8] sm:$0xff]
        %v317 = vld [vmem:[%s209 + $0xe0] sm:$0xff]
        %v318 = vld [vmem:[%s209 + $0xe8] sm:$0xff]
        %v319 = vld [vmem:[%s209 + $0xf0] sm:$0xff]
        %v320 = vld [vmem:[%s209 + $0xf8] sm:$0xff]
        %v321 = vld [vmem:[%s209 + $0x100] sm:$0xff]
        %v322 = vld [vmem:[%s209 + $0x108] sm:$0xff]
        %v323 = vld [vmem:[%s209 + $0x110] sm:$0xff]
        %v324 = vld [vmem:[%s209 + $0x118] sm:$0xff]
        %v325 = vld [vmem:[%s209 + $0x120] sm:$0xff]
        %v326 = vld [vmem:[%s209 + $0x128] sm:$0xff]
        %v327 = vld [vmem:[%s209 + $0x130] sm:$0xff]
        %v328 = vld [vmem:[%s209 + $0x138] sm:$0xff]
        %v329 = vld [vmem:[%s209 + $0x140] sm:$0xff]
        %v330 = vld [vmem:[%s209 + $0x148] sm:$0xff]
        %v331 = vld [vmem:[%s209 + $0x150] sm:$0xff]
        %v332 = vld [vmem:[%s209 + $0x158] sm:$0xff]
        %v333 = vld [vmem:[%s209 + $0x160] sm:$0xff]
        %v334 = vld [vmem:[%s209 + $0x168] sm:$0xff]
        %v335 = vld [vmem:[%s209 + $0x170] sm:$0xff]
        %v336 = vld [vmem:[%s209 + $0x178] sm:$0xff]
        %v337 = vld [vmem:[%s209 + $0x180] sm:$0xff]
        %v338 = vld [vmem:[%s209 + $0x188] sm:$0xff]
        %v339 = vld [vmem:[%s209 + $0x190] sm:$0xff]
        %v340 = vld [vmem:[%s209 + $0x198] sm:$0xff]
        %v341 = vld [vmem:[%s209 + $0x1a0] sm:$0xff]
        %v342 = vld [vmem:[%s209 + $0x1a8] sm:$0xff]
        %v343 = vld [vmem:[%s209 + $0x1b0] sm:$0xff]
        %v344 = vld [vmem:[%s209 + $0x1b8] sm:$0xff]
        %v345 = vld [vmem:[%s209 + $0x1c0] sm:$0xff]
        %v346 = vld [vmem:[%s209 + $0x1c8] sm:$0xff]
        %v347 = vld [vmem:[%s209 + $0x1d0] sm:$0xff]
        %v348 = vld [vmem:[%s209 + $0x1d8] sm:$0xff]
        %v349 = vld [vmem:[%s209 + $0x1e0] sm:$0xff]
        %v350 = vld [vmem:[%s209 + $0x1e8] sm:$0xff]
        %v351 = vld [vmem:[%s209 + $0x1f0] sm:$0xff]
        %v352 = vld [vmem:[%s209 + $0x1f8] sm:$0xff]
        %v353 = vmul.f32 %v289, %v289
        %v354 = vmul.f32 %v290, %v290
        %v355 = vmul.f32 %v291, %v291
        %v356 = vmul.f32 %v292, %v292
        %v357 = vmul.f32 %v293, %v293
        %v358 = vmul.f32 %v294, %v294
        %v359 = vmul.f32 %v295, %v295
        %v360 = vmul.f32 %v296, %v296
        %v361 = vmul.f32 %v297, %v297
        %v362 = vmul.f32 %v298, %v298
        %v363 = vmul.f32 %v299, %v299
        %v364 = vmul.f32 %v300, %v300
        %v365 = vmul.f32 %v301, %v301
        %v366 = vmul.f32 %v302, %v302
        %v367 = vmul.f32 %v303, %v303
        %v368 = vmul.f32 %v304, %v304
        %v369 = vmul.f32 %v305, %v305
        %v370 = vmul.f32 %v306, %v306
        %v371 = vmul.f32 %v307, %v307
        %v372 = vmul.f32 %v308, %v308
        %v373 = vmul.f32 %v309, %v309
        %v374 = vmul.f32 %v310, %v310
        %v375 = vmul.f32 %v311, %v311
        %v376 = vmul.f32 %v312, %v312
        %v377 = vmul.f32 %v313, %v313
        %v378 = vmul.f32 %v314, %v314
        %v379 = vmul.f32 %v315, %v315
        %v380 = vmul.f32 %v316, %v316
        %v381 = vmul.f32 %v317, %v317
        %v382 = vmul.f32 %v318, %v318
        %v383 = vmul.f32 %v319, %v319
        %v384 = vmul.f32 %v320, %v320
        %v385 = vmul.f32 %v321, %v321
        %v386 = vmul.f32 %v322, %v322
        %v387 = vmul.f32 %v323, %v323
        %v388 = vmul.f32 %v324, %v324
        %v389 = vmul.f32 %v325, %v325
        %v390 = vmul.f32 %v326, %v326
        %v391 = vmul.f32 %v327, %v327
        %v392 = vmul.f32 %v328, %v328
        %v393 = vmul.f32 %v329, %v329
        %v394 = vmul.f32 %v330, %v330
        %v395 = vmul.f32 %v331, %v331
        %v396 = vmul.f32 %v332, %v332
        %v397 = vmul.f32 %v333, %v333
        %v398 = vmul.f32 %v334, %v334
        %v399 = vmul.f32 %v335, %v335
        %v400 = vmul.f32 %v336, %v336
        %v401 = vmul.f32 %v337, %v337
        %v402 = vmul.f32 %v338, %v338
        %v403 = vmul.f32 %v339, %v339
        %v404 = vmul.f32 %v340, %v340
        %v405 = vmul.f32 %v341, %v341
        %v406 = vmul.f32 %v342, %v342
        %v407 = vmul.f32 %v343, %v343
        %v408 = vmul.f32 %v344, %v344
        %v409 = vmul.f32 %v345, %v345
        %v410 = vmul.f32 %v346, %v346
        %v411 = vmul.f32 %v347, %v347
        %v412 = vmul.f32 %v348, %v348
        %v413 = vmul.f32 %v349, %v349
        %v414 = vmul.f32 %v350, %v350
        %v415 = vmul.f32 %v351, %v351
        %v416 = vmul.f32 %v352, %v352
        %417 = vst [vmem:[#allocation2 + $0x60] sm:$0xff] %v353
        %418 = vst [vmem:[#allocation2 + $0x68] sm:$0xff] %v354
        %419 = vst [vmem:[#allocation2 + $0x70] sm:$0xff] %v355
        %420 = vst [vmem:[#allocation2 + $0x78] sm:$0xff] %v356
        %421 = vst [vmem:[#allocation2 + $0x80] sm:$0xff] %v357
        %422 = vst [vmem:[#allocation2 + $0x88] sm:$0xff] %v358
        %423 = vst [vmem:[#allocation2 + $0x90] sm:$0xff] %v359
        %424 = vst [vmem:[#allocation2 + $0x98] sm:$0xff] %v360
        %425 = vst [vmem:[#allocation2 + $0xa0] sm:$0xff] %v361
        %426 = vst [vmem:[#allocation2 + $0xa8] sm:$0xff] %v362
        %427 = vst [vmem:[#allocation2 + $0xb0] sm:$0xff] %v363
        %428 = vst [vmem:[#allocation2 + $0xb8] sm:$0xff] %v364
        %429 = vst [vmem:[#allocation2 + $0xc0] sm:$0xff] %v365
        %430 = vst [vmem:[#allocation2 + $0xc8] sm:$0xff] %v366
        %431 = vst [vmem:[#allocation2 + $0xd0] sm:$0xff] %v367
        %432 = vst [vmem:[#allocation2 + $0xd8] sm:$0xff] %v368
        %433 = vst [vmem:[#allocation2 + $0xe0] sm:$0xff] %v369
        %434 = vst [vmem:[#allocation2 + $0xe8] sm:$0xff] %v370
        %435 = vst [vmem:[#allocation2 + $0xf0] sm:$0xff] %v371
        %436 = vst [vmem:[#allocation2 + $0xf8] sm:$0xff] %v372
        %437 = vst [vmem:[#allocation2 + $0x100] sm:$0xff] %v373
        %438 = vst [vmem:[#allocation2 + $0x108] sm:$0xff] %v374
        %439 = vst [vmem:[#allocation2 + $0x110] sm:$0xff] %v375
        %440 = vst [vmem:[#allocation2 + $0x118] sm:$0xff] %v376
        %441 = vst [vmem:[#allocation2 + $0x120] sm:$0xff] %v377
        %442 = vst [vmem:[#allocation2 + $0x128] sm:$0xff] %v378
        %443 = vst [vmem:[#allocation2 + $0x130] sm:$0xff] %v379
        %444 = vst [vmem:[#allocation2 + $0x138] sm:$0xff] %v380
        %445 = vst [vmem:[#allocation2 + $0x140] sm:$0xff] %v381
        %446 = vst [vmem:[#allocation2 + $0x148] sm:$0xff] %v382
        %447 = vst [vmem:[#allocation2 + $0x150] sm:$0xff] %v383
        %448 = vst [vmem:[#allocation2 + $0x158] sm:$0xff] %v384
        %449 = vst [vmem:[#allocation2 + $0x160] sm:$0xff] %v385
        %450 = vst [vmem:[#allocation2 + $0x168] sm:$0xff] %v386
        %451 = vst [vmem:[#allocation2 + $0x170] sm:$0xff] %v387
        %452 = vst [vmem:[#allocation2 + $0x178] sm:$0xff] %v388
        %453 = vst [vmem:[#allocation2 + $0x180] sm:$0xff] %v389
        %454 = vst [vmem:[#allocation2 + $0x188] sm:$0xff] %v390
        %455 = vst [vmem:[#allocation2 + $0x190] sm:$0xff] %v391
        %456 = vst [vmem:[#allocation2 + $0x198] sm:$0xff] %v392
        %457 = vst [vmem:[#allocation2 + $0x1a0] sm:$0xff] %v393
        %458 = vst [vmem:[#allocation2 + $0x1a8] sm:$0xff] %v394
        %459 = vst [vmem:[#allocation2 + $0x1b0] sm:$0xff] %v395
        %460 = vst [vmem:[#allocation2 + $0x1b8] sm:$0xff] %v396
        %461 = vst [vmem:[#allocation2 + $0x1c0] sm:$0xff] %v397
        %462 = vst [vmem:[#allocation2 + $0x1c8] sm:$0xff] %v398
        %463 = vst [vmem:[#allocation2 + $0x1d0] sm:$0xff] %v399
        %464 = vst [vmem:[#allocation2 + $0x1d8] sm:$0xff] %v400
        %465 = vst [vmem:[#allocation2 + $0x1e0] sm:$0xff] %v401
        %466 = vst [vmem:[#allocation2 + $0x1e8] sm:$0xff] %v402
        %467 = vst [vmem:[#allocation2 + $0x1f0] sm:$0xff] %v403
        %468 = vst [vmem:[#allocation2 + $0x1f8] sm:$0xff] %v404
        %469 = vst [vmem:[#allocation2 + $0x200] sm:$0xff] %v405
        %470 = vst [vmem:[#allocation2 + $0x208] sm:$0xff] %v406
        %471 = vst [vmem:[#allocation2 + $0x210] sm:$0xff] %v407
        %472 = vst [vmem:[#allocation2 + $0x218] sm:$0xff] %v408
        %473 = vst [vmem:[#allocation2 + $0x220] sm:$0xff] %v409
        %474 = vst [vmem:[#allocation2 + $0x228] sm:$0xff] %v410
        %475 = vst [vmem:[#allocation2 + $0x230] sm:$0xff] %v411
        %476 = vst [vmem:[#allocation2 + $0x238] sm:$0xff] %v412
        %477 = vst [vmem:[#allocation2 + $0x240] sm:$0xff] %v413
        %478 = vst [vmem:[#allocation2 + $0x248] sm:$0xff] %v414
        %479 = vst [vmem:[#allocation2 + $0x250] sm:$0xff] %v415
        %480 = vst [vmem:[#allocation2 + $0x258] sm:$0xff] %v416
        loop: start=0, step=1, limit=16
        $region49: #{tpu_custom_call.1} parent=31 // loop_pre_header
          _
        $region50: #{tpu_custom_call.1} parent=31 // loop_header
          %s482 = sphi 0, %s486
          %p483 = scmp.ge.s32.totalorder %s482, 16
        $region51: #{tpu_custom_call.1} parent=31 // loop_header_branch
          %485 = sbr.rel (%p483) target = $region55
        $region52: #{tpu_custom_call.1} parent=31 // loop_body
          %s487 = smul.u32 %s482, 32
          loop: start=0, step=1, limit=12
          $region56: #{tpu_custom_call.1} parent=52 // loop_pre_header
            _
          $region57: #{tpu_custom_call.1} parent=52 // loop_header
            %s489 = sphi 0, %s493
            %p490 = scmp.ge.s32.totalorder %s489, 12
            %v494 = vphi 0.0, %v663
            %v495 = vphi 0.0, %v664
            %v496 = vphi 0.0, %v665
            %v497 = vphi 0.0, %v666
          $region58: #{tpu_custom_call.1} parent=52 // loop_header_branch
            %492 = sbr.rel (%p490) target = $region62
          $region59: #{tpu_custom_call.1} parent=52 // loop_body
            %s498 = smul.u32 %s489, 8
            %s499 = scalar_lea.vmem [#allocation6], %s498
            %v500 = vld [vmem:[%s499] sm:$0x1]
            %s501 = sadd.s32 %s487, 1
            %s502 = sadd.s32 %s501, %s498
            %s503 = scalar_lea.vmem [#allocation2], %s502
            %v504 = vld [vmem:[%s503] sm:$0xff]
            %v505 = vld [vmem:[%s503 + $0x8] sm:$0xff]
            %v506 = vld [vmem:[%s503 + $0x10] sm:$0xff]
            %v507 = vld [vmem:[%s503 + $0x18] sm:$0xff]
            %v508 = vlaneseq
            %v509 = vshrl.u32 %v508, 7
            %v510 = vsub.s32 0, %v509
            %v511 = vrot.slane %v500, %v510
            %v512 = vmul.f32 %v511, %v504
            %v513 = vmul.f32 %v511, %v505
            %v514 = vmul.f32 %v511, %v506
            %v515 = vmul.f32 %v511, %v507
            %v516 = vadd.f32 %v494, %v512
            %v517 = vadd.f32 %v495, %v513
            %v518 = vadd.f32 %v496, %v514
            %v519 = vadd.f32 %v497, %v515
            %s520 = sadd.s32 %s498, 1
            %s521 = scalar_lea.vmem [#allocation6], %s520
            %v522 = vld [vmem:[%s521] sm:$0x1]
            %s523 = sadd.s32 %s501, %s520
            %s524 = scalar_lea.vmem [#allocation2], %s523
            %v525 = vld [vmem:[%s524] sm:$0xff]
            %v526 = vld [vmem:[%s524 + $0x8] sm:$0xff]
            %v527 = vld [vmem:[%s524 + $0x10] sm:$0xff]
            %v528 = vld [vmem:[%s524 + $0x18] sm:$0xff]
            %v529 = vlaneseq
            %v530 = vshrl.u32 %v529, 7
            %v531 = vsub.s32 0, %v530
            %v532 = vrot.slane %v522, %v531
            %v533 = vmul.f32 %v532, %v525
            %v534 = vmul.f32 %v532, %v526
            %v535 = vmul.f32 %v532, %v527
            %v536 = vmul.f32 %v532, %v528
            %v537 = vadd.f32 %v516, %v533
            %v538 = vadd.f32 %v517, %v534
            %v539 = vadd.f32 %v518, %v535
            %v540 = vadd.f32 %v519, %v536
            %s541 = sadd.s32 %s498, 2
            %s542 = scalar_lea.vmem [#allocation6], %s541
            %v543 = vld [vmem:[%s542] sm:$0x1]
            %s544 = sadd.s32 %s501, %s541
            %s545 = scalar_lea.vmem [#allocation2], %s544
            %v546 = vld [vmem:[%s545] sm:$0xff]
            %v547 = vld [vmem:[%s545 + $0x8] sm:$0xff]
            %v548 = vld [vmem:[%s545 + $0x10] sm:$0xff]
            %v549 = vld [vmem:[%s545 + $0x18] sm:$0xff]
            %v550 = vlaneseq
            %v551 = vshrl.u32 %v550, 7
            %v552 = vsub.s32 0, %v551
            %v553 = vrot.slane %v543, %v552
            %v554 = vmul.f32 %v553, %v546
            %v555 = vmul.f32 %v553, %v547
            %v556 = vmul.f32 %v553, %v548
            %v557 = vmul.f32 %v553, %v549
            %v558 = vadd.f32 %v537, %v554
            %v559 = vadd.f32 %v538, %v555
            %v560 = vadd.f32 %v539, %v556
            %v561 = vadd.f32 %v540, %v557
            %s562 = sadd.s32 %s498, 3
            %s563 = scalar_lea.vmem [#allocation6], %s562
            %v564 = vld [vmem:[%s563] sm:$0x1]
            %s565 = sadd.s32 %s501, %s562
            %s566 = scalar_lea.vmem [#allocation2], %s565
            %v567 = vld [vmem:[%s566] sm:$0xff]
            %v568 = vld [vmem:[%s566 + $0x8] sm:$0xff]
            %v569 = vld [vmem:[%s566 + $0x10] sm:$0xff]
            %v570 = vld [vmem:[%s566 + $0x18] sm:$0xff]
            %v571 = vlaneseq
            %v572 = vshrl.u32 %v571, 7
            %v573 = vsub.s32 0, %v572
            %v574 = vrot.slane %v564, %v573
            %v575 = vmul.f32 %v574, %v567
            %v576 = vmul.f32 %v574, %v568
            %v577 = vmul.f32 %v574, %v569
            %v578 = vmul.f32 %v574, %v570
            %v579 = vadd.f32 %v558, %v575
            %v580 = vadd.f32 %v559, %v576
            %v581 = vadd.f32 %v560, %v577
            %v582 = vadd.f32 %v561, %v578
            %s583 = sadd.s32 %s498, 4
            %s584 = scalar_lea.vmem [#allocation6], %s583
            %v585 = vld [vmem:[%s584] sm:$0x1]
            %s586 = sadd.s32 %s501, %s583
            %s587 = scalar_lea.vmem [#allocation2], %s586
            %v588 = vld [vmem:[%s587] sm:$0xff]
            %v589 = vld [vmem:[%s587 + $0x8] sm:$0xff]
            %v590 = vld [vmem:[%s587 + $0x10] sm:$0xff]
            %v591 = vld [vmem:[%s587 + $0x18] sm:$0xff]
            %v592 = vlaneseq
            %v593 = vshrl.u32 %v592, 7
            %v594 = vsub.s32 0, %v593
            %v595 = vrot.slane %v585, %v594
            %v596 = vmul.f32 %v595, %v588
            %v597 = vmul.f32 %v595, %v589
            %v598 = vmul.f32 %v595, %v590
            %v599 = vmul.f32 %v595, %v591
            %v600 = vadd.f32 %v579, %v596
            %v601 = vadd.f32 %v580, %v597
            %v602 = vadd.f32 %v581, %v598
            %v603 = vadd.f32 %v582, %v599
            %s604 = sadd.s32 %s498, 5
            %s605 = scalar_lea.vmem [#allocation6], %s604
            %v606 = vld [vmem:[%s605] sm:$0x1]
            %s607 = sadd.s32 %s501, %s604
            %s608 = scalar_lea.vmem [#allocation2], %s607
            %v609 = vld [vmem:[%s608] sm:$0xff]
            %v610 = vld [vmem:[%s608 + $0x8] sm:$0xff]
            %v611 = vld [vmem:[%s608 + $0x10] sm:$0xff]
            %v612 = vld [vmem:[%s608 + $0x18] sm:$0xff]
            %v613 = vlaneseq
            %v614 = vshrl.u32 %v613, 7
            %v615 = vsub.s32 0, %v614
            %v616 = vrot.slane %v606, %v615
            %v617 = vmul.f32 %v616, %v609
            %v618 = vmul.f32 %v616, %v610
            %v619 = vmul.f32 %v616, %v611
            %v620 = vmul.f32 %v616, %v612
            %v621 = vadd.f32 %v600, %v617
            %v622 = vadd.f32 %v601, %v618
            %v623 = vadd.f32 %v602, %v619
            %v624 = vadd.f32 %v603, %v620
            %s625 = sadd.s32 %s498, 6
            %s626 = scalar_lea.vmem [#allocation6], %s625
            %v627 = vld [vmem:[%s626] sm:$0x1]
            %s628 = sadd.s32 %s501, %s625
            %s629 = scalar_lea.vmem [#allocation2], %s628
            %v630 = vld [vmem:[%s629] sm:$0xff]
            %v631 = vld [vmem:[%s629 + $0x8] sm:$0xff]
            %v632 = vld [vmem:[%s629 + $0x10] sm:$0xff]
            %v633 = vld [vmem:[%s629 + $0x18] sm:$0xff]
            %v634 = vlaneseq
            %v635 = vshrl.u32 %v634, 7
            %v636 = vsub.s32 0, %v635
            %v637 = vrot.slane %v627, %v636
            %v638 = vmul.f32 %v637, %v630
            %v639 = vmul.f32 %v637, %v631
            %v640 = vmul.f32 %v637, %v632
            %v641 = vmul.f32 %v637, %v633
            %v642 = vadd.f32 %v621, %v638
            %v643 = vadd.f32 %v622, %v639
            %v644 = vadd.f32 %v623, %v640
            %v645 = vadd.f32 %v624, %v641
            %s646 = sadd.s32 %s498, 7
            %s647 = scalar_lea.vmem [#allocation6], %s646
            %v648 = vld [vmem:[%s647] sm:$0x1]
            %s649 = sadd.s32 %s501, %s646
            %s650 = scalar_lea.vmem [#allocation2], %s649
            %v651 = vld [vmem:[%s650] sm:$0xff]
            %v652 = vld [vmem:[%s650 + $0x8] sm:$0xff]
            %v653 = vld [vmem:[%s650 + $0x10] sm:$0xff]
            %v654 = vld [vmem:[%s650 + $0x18] sm:$0xff]
            %v655 = vlaneseq
            %v656 = vshrl.u32 %v655, 7
            %v657 = vsub.s32 0, %v656
            %v658 = vrot.slane %v648, %v657
            %v659 = vmul.f32 %v658, %v651
            %v660 = vmul.f32 %v658, %v652
            %v661 = vmul.f32 %v658, %v653
            %v662 = vmul.f32 %v658, %v654
            %v663 = vadd.f32 %v642, %v659
            %v664 = vadd.f32 %v643, %v660
            %v665 = vadd.f32 %v644, %v661
            %v666 = vadd.f32 %v645, %v662
          $region60: #{tpu_custom_call.1} parent=52 // loop_footer
            %s493 = sadd.s32 1, %s489
          $region61: #{tpu_custom_call.1} parent=52 // loop_footer_branch
            %488 = sbr.rel target = $region57
          $region62: #{tpu_custom_call.1} parent=52 // loop_exit
            _
          %v667 = vld [vmem:[%s242] sm:$0x1]
          %v669 = vlaneseq
          %v670 = vshrl.u32 %v669, 7
          %v671 = vsub.s32 0, %v670
          %v672 = vrot.slane %v667, %v671
          %v674 = vadd.f32 %v672, %v494
          %v675 = vadd.f32 %v672, %v495
          %v676 = vadd.f32 %v672, %v496
          %v677 = vadd.f32 %v672, %v497
          %v678 = vrsqrt.pop %v674
          %v679 = vmul.f32 %v674, %v678
          %vm680 = vcmp.eq.f32.partialorder %v674, inf
          %v681 = vsel %vm680, %v674, %v679
          %vm682 = vcmp.eq.f32.partialorder %v674, 0.0
          %v683 = vand.u32 %v674, 2147483648
          %v684 = vsel %vm682, %v683, %v681
          %v685 = vrsqrt.pop %v675
          %v686 = vmul.f32 %v675, %v685
          %vm687 = vcmp.eq.f32.partialorder %v675, inf
          %v688 = vsel %vm687, %v675, %v686
          %vm689 = vcmp.eq.f32.partialorder %v675, 0.0
          %v690 = vand.u32 %v675, 2147483648
          %v691 = vsel %vm689, %v690, %v688
          %v692 = vrsqrt.pop %v676
          %v693 = vmul.f32 %v676, %v692
          %vm694 = vcmp.eq.f32.partialorder %v676, inf
          %v695 = vsel %vm694, %v676, %v693
          %vm696 = vcmp.eq.f32.partialorder %v676, 0.0
          %v697 = vand.u32 %v676, 2147483648
          %v698 = vsel %vm696, %v697, %v695
          %v699 = vrsqrt.pop %v677
          %v700 = vmul.f32 %v677, %v699
          %vm701 = vcmp.eq.f32.partialorder %v677, inf
          %v702 = vsel %vm701, %v677, %v700
          %vm703 = vcmp.eq.f32.partialorder %v677, 0.0
          %v704 = vand.u32 %v677, 2147483648
          %v705 = vsel %vm703, %v704, %v702
          %s706 = scalar_lea.vmem %s238, %s487 [#allocation8]
          %707 = vst [vmem:[%s706] sm:$0xff] %v684
          %708 = vst [vmem:[%s706 + $0x8] sm:$0xff] %v691
          %709 = vst [vmem:[%s706 + $0x10] sm:$0xff] %v698
          %710 = vst [vmem:[%s706 + $0x18] sm:$0xff] %v705
        $region53: #{tpu_custom_call.1} parent=31 // loop_footer
          %s486 = sadd.s32 1, %s482
        $region54: #{tpu_custom_call.1} parent=31 // loop_footer_branch
          %481 = sbr.rel target = $region50
        $region55: #{tpu_custom_call.1} parent=31 // loop_exit
          _
        %s711 = sand.u32 %s123, 1
        %s712 = scalar_lea.sflag [#allocation5], %s711
        %s713 = sand.u32 %s123, 1
        %s714 = smul.addr %s713, 512
        %s715 = scalar_lea.vmem [#allocation8], %s714
        // Predicated region
        $region63: #{tpu_custom_call.1} parent=31 // pred_check
          %p716 = pneg %p133
        $region64: #{tpu_custom_call.1} parent=31 // pred_check_branch
          %718 = sbr.rel (%p716) target = $region66
        $region65: #{tpu_custom_call.1} parent=31 // pred_region
          %s719 = smul.u32 64, %s26
          %s721 = ssub.s32 8192, 8192
          %722 = vsyncadd %s712, %s721
          %s723 = sadd.s32 %s25, %s719
          %s724 = smul.addr %s723, 128
          %s725 = scalar_lea.hbm %s3, %s724
          %s726 = sshll.u32 %s715, 4
          %s727 = int_to_ptr.vmem [resolvable:$true] %s726
          %732 = dma.vmem_to_hbm [thread:$0]  %s727, 8192, %s725, %s712, 128, 128, 8
        $region66: #{tpu_custom_call.1} parent=31 // pred_fallthru
          _
      $region32: #{tpu_custom_call.1} parent=5 // pred_fallthru
        _
      %p733 = scmp.le.s32.totalorder 2, %s16
      // Predicated region
      $region67: #{tpu_custom_call.1} parent=5 // pred_check
        %p734 = pneg %p733
      $region68: #{tpu_custom_call.1} parent=5 // pred_check_branch
        %736 = sbr.rel (%p734) target = $region70
      $region69: #{tpu_custom_call.1} parent=5 // pred_region
        %s737 = ssub.s32 %s16, 2
        // Predicated region
        $region71: #{tpu_custom_call.1} parent=69 // pred_check
          %p738 = pneg %p139
        $region72: #{tpu_custom_call.1} parent=69 // pred_check_branch
          %740 = sbr.rel (%p738) target = $region74
        $region73: #{tpu_custom_call.1} parent=69 // pred_region
          %s741 = sand.u32 %s124, 1
          %s742 = scalar_lea.sflag [#allocation5], %s741
          %s743 = sand.u32 %s124, 1
          %s744 = smul.addr %s743, 512
          %s745 = scalar_lea.vmem [#allocation8], %s744
          %746 = dma.done %s742, 8192
        $region74: #{tpu_custom_call.1} parent=69 // pred_fallthru
          _
      $region70: #{tpu_custom_call.1} parent=5 // pred_fallthru
        _
    $region6: #{tpu_custom_call.1} parent=1 // loop_footer
      %s20 = sadd.s32 1, %s16
    $region7: #{tpu_custom_call.1} parent=1 // loop_footer_branch
      %15 = sbr.rel target = $region3
    $region8: #{tpu_custom_call.1} parent=1 // loop_exit
      _
    %747 = vsyncpa [#allocation4], 1
    %s748 = scalar_lea.sflag [#allocation4], 1
    %749 = vsyncpa %s748, 1
    %750 = vsyncpa [#allocation7], 1
    %751 = vsyncpa [#allocation5], 1
    %s752 = scalar_lea.sflag [#allocation5], 1
    %753 = vsyncpa %s752, 1

</llo_original>
